<compile_context>
chip_gen: v5e
topology: v5e:2x2
jax: 0.10.0
libtpu: 0.0.40
codegen_flags: <defaults>
</compile_context>

<pallas_src>
import jax
import jax.numpy as jnp
from jax import lax
from jax.experimental import pallas as pl
from jax.experimental.pallas import tpu as pltpu


# ---------------------------------------------------------------------------
# Parameter preparation (done ONCE, outside the per-step / per-sequence path)
# ---------------------------------------------------------------------------
def prepare_params(weight, bias):
    """weight: (7H, 2H) PyTorch nn.Linear layout; bias: (7H,).

    Returns (W_x, W_h, b) with W_x, W_h: (H, 7H) bf16 and b: (1, 7H) f32 so
    that  x @ W_x + h @ W_h + b == Linear(cat([x, h], -1)).
    Splitting W removes the per-step [x | h] lane concat from the kernel.
    """
    two_h = weight.shape[1]
    H = two_h // 2
    w = jnp.transpose(weight)                      # (2H, 7H)
    w_x = w[:H].astype(jnp.bfloat16)               # (H, 7H)
    w_h = w[H:].astype(jnp.bfloat16)               # (H, 7H)
    b = bias.reshape(1, -1).astype(jnp.float32)    # (1, 7H)
    return w_x, w_h, b


def unpack_gates(packed):
    """(..., 4H) packed slab -> (cell_i, cell_bar_i, gate_decay, gate_output)."""
    H = packed.shape[-1] // 4
    r = packed.reshape(packed.shape[:-1] + (4, H))
    return r[..., 0, :], r[..., 1, :], r[..., 2, :], r[..., 3, :]


# ---------------------------------------------------------------------------
# Shared gate math (inside the kernels; f32 except the bf16 MXU operands)
# ---------------------------------------------------------------------------
def _gate_math(x, h, c, c_bar, wx_ref, wh_ref, b_ref, H):
    pre = (jnp.dot(x.astype(jnp.bfloat16), wx_ref[...],
                   preferred_element_type=jnp.float32)
           + jnp.dot(h.astype(jnp.bfloat16), wh_ref[...],
                     preferred_element_type=jnp.float32)
           + b_ref[...])
    gate_input      = jax.nn.sigmoid(pre[:, 0 * H:1 * H])
    gate_forget     = jax.nn.sigmoid(pre[:, 1 * H:2 * H])
    gate_output     = jax.nn.sigmoid(pre[:, 2 * H:3 * H])
    gate_pre_c      = jnp.tanh(pre[:, 3 * H:4 * H])
    gate_input_bar  = jax.nn.sigmoid(pre[:, 4 * H:5 * H])
    gate_forget_bar = jax.nn.sigmoid(pre[:, 5 * H:6 * H])
    gate_decay      = jax.nn.softplus(pre[:, 6 * H:7 * H])

    cell_i = gate_forget * c + gate_input * gate_pre_c
    cell_bar_i = gate_forget_bar * c_bar + gate_input_bar * gate_pre_c
    return cell_i, cell_bar_i, gate_decay, gate_output


# ---------------------------------------------------------------------------
# Single-step kernel (one CTLSTMCell.forward call)
# ---------------------------------------------------------------------------
def _ctlstm_cell_kernel(x_ref, h_ref, c_ref, cbar_ref,
                        wx_ref, wh_ref, b_ref, out_ref):
    H = x_ref.shape[-1]
    cell_i, cell_bar_i, gd, go = _gate_math(
        x_ref[...], h_ref[...], c_ref[...], cbar_ref[...],
        wx_ref, wh_ref, b_ref, H)
    # single lane-dense (B, 4H) writeback
    out_ref[...] = jnp.concatenate([cell_i, cell_bar_i, gd, go], axis=-1)


def ctlstm_cell_forward(rnn_input, hidden, cell, cell_bar, w_x, w_h, b):
    """One CTLSTMCell.forward step.  Params from prepare_params().

    Returns the packed (B, 4H) slab [cell_i | cell_bar_i | decay | outgate];
    use unpack_gates() to split lazily.
    """
    B, H = rnn_input.shape
    vmem = pl.BlockSpec(memory_space=pltpu.MemorySpace.VMEM)
    return pl.pallas_call(
        _ctlstm_cell_kernel,
        out_shape=jax.ShapeDtypeStruct((B, 4 * H), jnp.float32),
        in_specs=[vmem] * 7,
        out_specs=vmem,
    )(rnn_input, hidden, cell, cell_bar, w_x, w_h, b)


# ---------------------------------------------------------------------------
# Sequence-fused kernel: grid over chunks of Tc timesteps, weights resident,
# state carried in lane-offset-0 VMEM scratch.  Per step: forward, then
# decay() with dtime[t] -> the (h, c) fed into the next event.
# ---------------------------------------------------------------------------
def _ctlstm_seq_kernel(x_ref, dt_ref, init_ref, wx_ref, wh_ref, b_ref,
                       out_ref, carry_ref):
    # x_ref:    (Tc, B, H)    per-step event embeddings (chunk of Tc steps)
    # dt_ref:   (Tc, B, 1)    per-step inter-event times (chunked with x)
    # init_ref: (3, B, H)     [h0, c0, c_bar0]      (VMEM-resident)
    # wx_ref:   (H, 7H) bf16; wh_ref: (H, 7H) bf16; b_ref: (1, 7H) f32
    # out_ref:  (Tc, B, 4H)   [cell_i | cell_bar_i | decay | outgate]
    # carry_ref: VMEM scratch (3, B, H) f32 -> [h, c, c_bar], persists across
    #            grid steps, every plane at lane offset 0.
    H = x_ref.shape[-1]
    Tc = x_ref.shape[0]
    chunk = pl.program_id(0)

    @pl.when(chunk == 0)
    def _():
        carry_ref[...] = init_ref[...]

    def step(i, carry_token):
        x = x_ref[i]                     # (B, H)
        h = carry_ref[0]
        c = carry_ref[1]
        c_bar = carry_ref[2]

        cell_i, cell_bar_i, gd, go = _gate_math(
            x, h, c, c_bar, wx_ref, wh_ref, b_ref, H)

        # lane-dense packed writeback for this step
        out_ref[i] = jnp.concatenate([cell_i, cell_bar_i, gd, go], axis=-1)

        # CTLSTMCell.decay(...) between events -> next pre-event (c, h)
        dt = dt_ref[i]                   # (B, 1)
        c_dec = cell_bar_i + (cell_i - cell_bar_i) * jnp.exp(-gd * dt)
        h_dec = go * jnp.tanh(c_dec)
        carry_ref[0] = h_dec
        carry_ref[1] = c_dec
        carry_ref[2] = cell_bar_i        # c_bar is carried un-decayed
        return carry_token

    lax.fori_loop(0, Tc, step, 0, unroll=True)


def ctlstm_sequence_forward(x_seq, dtimes, h0, c0, cbar0, w_x, w_h, b,
                            *, time_chunk=4):
    """Runs T chained CTLSTM cell steps in one pallas_call.

    x_seq: (T, B, H); dtimes: (T, B).  Returns the packed (T, B, 4H) slab
    [cell_i | cell_bar_i | gate_decay | gate_output]; unpack lazily with
    unpack_gates().
    """
    T, B, H = x_seq.shape
    Tc = min(time_chunk, T)
    assert T % Tc == 0, "sequence length must be a multiple of time_chunk"

    init = jnp.stack([h0, c0, cbar0], axis=0)                   # (3, B, H)
    dt = dtimes.reshape(T, B, 1).astype(jnp.float32)

    grid_spec = pltpu.PrefetchScalarGridSpec(
        num_scalar_prefetch=0,
        grid=(T // Tc,),
        in_specs=[
            pl.BlockSpec((Tc, B, H), lambda t: (t, 0, 0)),      # x chunk
            pl.BlockSpec((Tc, B, 1), lambda t: (t, 0, 0)),      # dt chunk
            pl.BlockSpec((3, B, H), lambda t: (0, 0, 0)),       # init (resident)
            pl.BlockSpec((H, 7 * H), lambda t: (0, 0)),         # W_x (resident)
            pl.BlockSpec((H, 7 * H), lambda t: (0, 0)),         # W_h (resident)
            pl.BlockSpec((1, 7 * H), lambda t: (0, 0)),         # b  (resident)
        ],
        out_specs=pl.BlockSpec((Tc, B, 4 * H), lambda t: (t, 0, 0)),
        scratch_shapes=[pltpu.VMEM((3, B, H), jnp.float32)],
    )
    return pl.pallas_call(
        _ctlstm_seq_kernel,
        out_shape=jax.ShapeDtypeStruct((T, B, 4 * H), jnp.float32),
        grid_spec=grid_spec,
        compiler_params=pltpu.CompilerParams(
            dimension_semantics=("arbitrary",)),
    )(x_seq, dt, init, w_x, w_h, b)


# ---------------------------------------------------------------------------
# Pure-JAX references mirroring the PyTorch module
# ---------------------------------------------------------------------------
def ctlstm_cell_reference(rnn_input, hidden, cell, cell_bar, weight, bias,
                          matmul_dtype=jnp.float32):
    inp = jnp.concatenate([rnn_input, hidden], axis=-1)
    pre = jnp.dot(inp.astype(matmul_dtype),
                  weight.T.astype(matmul_dtype),
                  preferred_element_type=jnp.float32) + bias
    H = rnn_input.shape[-1]
    gi, gf, go, gc, gib, gfb, gd = [pre[:, i * H:(i + 1) * H] for i in range(7)]
    gi, gf, go, gib, gfb = map(jax.nn.sigmoid, (gi, gf, go, gib, gfb))
    gc = jnp.tanh(gc)
    gd = jax.nn.softplus(gd)
    cell_i = gf * cell + gi * gc
    cell_bar_i = gfb * cell_bar + gib * gc
    return cell_i, cell_bar_i, gd, go


def ctlstm_decay_reference(cell_i, cell_bar_i, gate_decay, gate_output, dtime):
    dt = dtime[:, None]
    c_t = cell_bar_i + (cell_i - cell_bar_i) * jnp.exp(-gate_decay * dt)
    h_t = gate_output * jnp.tanh(c_t)
    return c_t, h_t


def ctlstm_sequence_reference(x_seq, dtimes, h0, c0, cbar0, weight, bias,
                              matmul_dtype=jnp.float32):
    h, c, cbar = h0, c0, cbar0
    cells, cellbars, decays, outgates = [], [], [], []
    for t in range(x_seq.shape[0]):
        cell_i, cell_bar_i, gd, go = ctlstm_cell_reference(
            x_seq[t], h, c, cbar, weight, bias, matmul_dtype)
        cells.append(cell_i); cellbars.append(cell_bar_i)
        decays.append(gd); outgates.append(go)
        c, h = ctlstm_decay_reference(cell_i, cell_bar_i, gd, go, dtimes[t])
        cbar = cell_bar_i
    return (jnp.stack(cells), jnp.stack(cellbars),
            jnp.stack(decays), jnp.stack(outgates))


# ---------------------------------------------------------------------------
if __name__ == "__main__":
    batch_size = 2
    hidden_dim = 32
    seq_len = 8

    key = jax.random.PRNGKey(0)
    k1, k2, k3, k4, k5, k6, k7 = jax.random.split(key, 7)

    # nn.Linear(2H -> 7H) parameters (PyTorch layout)
    weight = jax.random.normal(k1, (7 * hidden_dim, 2 * hidden_dim),
                               jnp.float32) * 0.1
    bias = jax.random.normal(k2, (7 * hidden_dim,), jnp.float32) * 0.1

    # synthetic inputs / states
    x_seq = jax.random.normal(k3, (seq_len, batch_size, hidden_dim), jnp.float32)
    h0 = jax.random.normal(k4, (batch_size, hidden_dim), jnp.float32)
    c0 = jax.random.normal(k5, (batch_size, hidden_dim), jnp.float32)
    cbar0 = jax.random.normal(k6, (batch_size, hidden_dim), jnp.float32)
    dtimes = jnp.abs(jax.random.normal(k7, (seq_len, batch_size), jnp.float32)) * 0.5

    # parameters prepared once (hoisted transpose / split / bf16 cast)
    w_x, w_h, b_row = prepare_params(weight, bias)

    # ----- single-step cell kernel -----------------------------------------
    packed = ctlstm_cell_forward(x_seq[0], h0, c0, cbar0, w_x, w_h, b_row)
    packed = jax.block_until_ready(packed)
    outs = unpack_gates(packed)

    ref_bf16 = ctlstm_cell_reference(x_seq[0], h0, c0, cbar0, weight, bias,
                                     matmul_dtype=jnp.bfloat16)
    ref_f32 = ctlstm_cell_reference(x_seq[0], h0, c0, cbar0, weight, bias)
    for o, rb, rf in zip(outs, ref_bf16, ref_f32):
        assert o.shape == (batch_size, hidden_dim)
        assert jnp.allclose(o, rb, atol=5e-4, rtol=5e-4), \
            "single-step mismatch vs bf16-matmul reference"
        assert jnp.allclose(o, rf, atol=2e-2, rtol=2e-2), \
            "single-step mismatch vs f32 reference"

    # ----- sequence-fused kernel (chunked T grid, resident weights) --------
    seq_packed = ctlstm_sequence_forward(x_seq, dtimes, h0, c0, cbar0,
                                         w_x, w_h, b_row, time_chunk=4)
    seq_packed = jax.block_until_ready(seq_packed)
    seq_outs = unpack_gates(seq_packed)

    seq_ref_bf16 = ctlstm_sequence_reference(x_seq, dtimes, h0, c0, cbar0,
                                             weight, bias,
                                             matmul_dtype=jnp.bfloat16)
    seq_ref_f32 = ctlstm_sequence_reference(x_seq, dtimes, h0, c0, cbar0,
                                            weight, bias)
    for o, rb, rf in zip(seq_outs, seq_ref_bf16, seq_ref_f32):
        assert o.shape == (seq_len, batch_size, hidden_dim)
        assert jnp.allclose(o, rb, atol=2e-3, rtol=2e-3), \
            "sequence mismatch vs bf16-matmul reference"
        assert jnp.allclose(o, rf, atol=3e-2, rtol=3e-2), \
            "sequence mismatch vs f32 reference"

    # TODO(synk): decay(..., if_predict=True) (extra broadcast dims for
    # candidate-time prediction) is a trivially elementwise host-side reshape
    # variant and is left to plain JAX outside the kernel; dp_rate (dropout)
    # is unused in the module's forward and is not implemented.
    print("KERNEL_OK")
</pallas_src>

<mosaic_0001>
module attributes {stable_mosaic.version = 11 : i64} {
  func.func @_ctlstm_cell_kernel(%arg0: memref<2x32xf32, #tpu.memory_space<vmem>>, %arg1: memref<2x32xf32, #tpu.memory_space<vmem>>, %arg2: memref<2x32xf32, #tpu.memory_space<vmem>>, %arg3: memref<2x32xf32, #tpu.memory_space<vmem>>, %arg4: memref<32x224xbf16, #tpu.memory_space<vmem>>, %arg5: memref<32x224xbf16, #tpu.memory_space<vmem>>, %arg6: memref<1x224xf32, #tpu.memory_space<vmem>>, %arg7: memref<2x128xf32, #tpu.memory_space<vmem>>) attributes {dimension_semantics = [], scalar_prefetch = 0 : i64, scratch_operands = 0 : i64, tpu.core_type = #tpu.core_type<tc>} {
    %c0 = arith.constant 0 : index
    %c0_0 = arith.constant 0 : index
    %0 = vector.load %arg0[%c0, %c0_0] : memref<2x32xf32, #tpu.memory_space<vmem>>, vector<2x32xf32>
    %c0_1 = arith.constant 0 : index
    %c0_2 = arith.constant 0 : index
    %1 = vector.load %arg1[%c0_1, %c0_2] : memref<2x32xf32, #tpu.memory_space<vmem>>, vector<2x32xf32>
    %c0_3 = arith.constant 0 : index
    %c0_4 = arith.constant 0 : index
    %2 = vector.load %arg2[%c0_3, %c0_4] : memref<2x32xf32, #tpu.memory_space<vmem>>, vector<2x32xf32>
    %c0_5 = arith.constant 0 : index
    %c0_6 = arith.constant 0 : index
    %3 = vector.load %arg3[%c0_5, %c0_6] : memref<2x32xf32, #tpu.memory_space<vmem>>, vector<2x32xf32>
    %4 = arith.truncf %0 : vector<2x32xf32> to vector<2x32xbf16>
    %c0_7 = arith.constant 0 : index
    %c0_8 = arith.constant 0 : index
    %5 = vector.load %arg4[%c0_7, %c0_8] : memref<32x224xbf16, #tpu.memory_space<vmem>>, vector<32x224xbf16>
    %cst = arith.constant dense<0.000000e+00> : vector<2x224xf32>
    %6 = tpu.matmul %4, %5, %cst {dimension_numbers = #tpu.dot_dimension_numbers<[1], [0], [0], [1], [0, 0, 1, 1], [], []>} : vector<2x32xbf16>, vector<32x224xbf16>, vector<2x224xf32> -> vector<2x224xf32>
    %7 = arith.truncf %1 : vector<2x32xf32> to vector<2x32xbf16>
    %c0_9 = arith.constant 0 : index
    %c0_10 = arith.constant 0 : index
    %8 = vector.load %arg5[%c0_9, %c0_10] : memref<32x224xbf16, #tpu.memory_space<vmem>>, vector<32x224xbf16>
    %cst_11 = arith.constant dense<0.000000e+00> : vector<2x224xf32>
    %9 = tpu.matmul %7, %8, %cst_11 {dimension_numbers = #tpu.dot_dimension_numbers<[1], [0], [0], [1], [0, 0, 1, 1], [], []>} : vector<2x32xbf16>, vector<32x224xbf16>, vector<2x224xf32> -> vector<2x224xf32>
    %10 = arith.addf %6, %9 : vector<2x224xf32>
    %c0_12 = arith.constant 0 : index
    %c0_13 = arith.constant 0 : index
    %11 = vector.load %arg6[%c0_12, %c0_13] : memref<1x224xf32, #tpu.memory_space<vmem>>, vector<1x224xf32>
    %12 = vector.broadcast %11 : vector<1x224xf32> to vector<2x224xf32>
    %13 = arith.addf %10, %12 : vector<2x224xf32>
    %14 = vector.extract_strided_slice %13 {offsets = [0, 0], sizes = [2, 32], strides = [1, 1]} : vector<2x224xf32> to vector<2x32xf32>
    %15 = arith.negf %14 : vector<2x32xf32>
    %16 = math.exp %15 : vector<2x32xf32>
    %cst_14 = arith.constant 1.000000e+00 : f32
    %17 = vector.broadcast %cst_14 : f32 to vector<2x32xf32>
    %18 = arith.addf %17, %16 : vector<2x32xf32>
    %19 = arith.divf %17, %18 : vector<2x32xf32>
    %20 = vector.extract_strided_slice %13 {offsets = [0, 32], sizes = [2, 32], strides = [1, 1]} : vector<2x224xf32> to vector<2x32xf32>
    %21 = arith.negf %20 : vector<2x32xf32>
    %22 = math.exp %21 : vector<2x32xf32>
    %cst_15 = arith.constant 1.000000e+00 : f32
    %23 = vector.broadcast %cst_15 : f32 to vector<2x32xf32>
    %24 = arith.addf %23, %22 : vector<2x32xf32>
    %25 = arith.divf %23, %24 : vector<2x32xf32>
    %26 = vector.extract_strided_slice %13 {offsets = [0, 64], sizes = [2, 32], strides = [1, 1]} : vector<2x224xf32> to vector<2x32xf32>
    %27 = arith.negf %26 : vector<2x32xf32>
    %28 = math.exp %27 : vector<2x32xf32>
    %cst_16 = arith.constant 1.000000e+00 : f32
    %29 = vector.broadcast %cst_16 : f32 to vector<2x32xf32>
    %30 = arith.addf %29, %28 : vector<2x32xf32>
    %31 = arith.divf %29, %30 : vector<2x32xf32>
    %32 = vector.extract_strided_slice %13 {offsets = [0, 96], sizes = [2, 32], strides = [1, 1]} : vector<2x224xf32> to vector<2x32xf32>
    %33 = math.tanh %32 : vector<2x32xf32>
    %34 = vector.extract_strided_slice %13 {offsets = [0, 128], sizes = [2, 32], strides = [1, 1]} : vector<2x224xf32> to vector<2x32xf32>
    %35 = arith.negf %34 : vector<2x32xf32>
    %36 = math.exp %35 : vector<2x32xf32>
    %cst_17 = arith.constant 1.000000e+00 : f32
    %37 = vector.broadcast %cst_17 : f32 to vector<2x32xf32>
    %38 = arith.addf %37, %36 : vector<2x32xf32>
    %39 = arith.divf %37, %38 : vector<2x32xf32>
    %40 = vector.extract_strided_slice %13 {offsets = [0, 160], sizes = [2, 32], strides = [1, 1]} : vector<2x224xf32> to vector<2x32xf32>
    %41 = arith.negf %40 : vector<2x32xf32>
    %42 = math.exp %41 : vector<2x32xf32>
    %cst_18 = arith.constant 1.000000e+00 : f32
    %43 = vector.broadcast %cst_18 : f32 to vector<2x32xf32>
    %44 = arith.addf %43, %42 : vector<2x32xf32>
    %45 = arith.divf %43, %44 : vector<2x32xf32>
    %46 = vector.extract_strided_slice %13 {offsets = [0, 192], sizes = [2, 32], strides = [1, 1]} : vector<2x224xf32> to vector<2x32xf32>
    %cst_19 = arith.constant 0.000000e+00 : f32
    %47 = vector.broadcast %cst_19 : f32 to vector<2x32xf32>
    %48 = arith.maximumf %46, %47 : vector<2x32xf32>
    %49 = vector.broadcast %cst_19 : f32 to vector<2x32xf32>
    %50 = arith.subf %46, %49 : vector<2x32xf32>
    %51 = arith.cmpf one, %50, %50 : vector<2x32xf32>
    %52 = vector.broadcast %cst_19 : f32 to vector<2x32xf32>
    %53 = arith.addf %46, %52 : vector<2x32xf32>
    %54 = math.absf %50 : vector<2x32xf32>
    %cst_20 = arith.constant 0.000000e+00 : f32
    %55 = vector.broadcast %cst_20 : f32 to vector<2x32xf32>
    %56 = arith.subf %55, %54 : vector<2x32xf32>
    %57 = math.exp %56 : vector<2x32xf32>
    %58 = math.log1p %57 : vector<2x32xf32>
    %59 = arith.addf %48, %58 : vector<2x32xf32>
    %60 = arith.select %51, %53, %59 : vector<2x32xi1>, vector<2x32xf32>
    %61 = arith.mulf %25, %2 : vector<2x32xf32>
    %62 = arith.mulf %19, %33 : vector<2x32xf32>
    %63 = arith.addf %61, %62 : vector<2x32xf32>
    %64 = arith.mulf %45, %3 : vector<2x32xf32>
    %65 = arith.mulf %39, %33 : vector<2x32xf32>
    %66 = arith.addf %64, %65 : vector<2x32xf32>
    %67 = tpu.concatenate %63, %66, %60, %31 in 1 : vector<2x32xf32>, vector<2x32xf32>, vector<2x32xf32>, vector<2x32xf32> -> vector<2x128xf32>
    %c0_21 = arith.constant 0 : index
    %c0_22 = arith.constant 0 : index
    %68 = vector.load %arg7[%c0_21, %c0_22] : memref<2x128xf32, #tpu.memory_space<vmem>>, vector<2x128xf32>
    tpu.vector_store %arg7[%c0_21, %c0_22], %67 {strides = array<i32>} : memref<2x128xf32, #tpu.memory_space<vmem>>, vector<2x128xf32>,
    return
  }
}

</mosaic_0001>

<llo_original>
// kernel: tpu_custom_call.1
$region0: #{tpu_custom_call.1}
  #allocation0 [shape = 'u32[]', space=smem, size = 0x4, offset = 0x4, fixed_abs, tag = 'smem constant byte address 0x4 - core index']
  #allocation1 [shape = 'u32[72,128]{1,0:T(1,128)}', space=vmem, size = 0x9000, scoped, tag = 'internal scratch']
  %s0 = inlined_call_operand.hbm [shape: f32[2,32], index: 0, kind: input, shape index: {}]
  %s1 = inlined_call_operand.hbm [shape: f32[2,32], index: 1, kind: input, shape index: {}]
  %s2 = inlined_call_operand.hbm [shape: f32[2,32], index: 2, kind: input, shape index: {}]
  %s3 = inlined_call_operand.vmem [shape: f32[2,32], index: 3, kind: input, shape index: {}]
  %s4 = inlined_call_operand.hbm [shape: bf16[32,224], index: 4, kind: input, shape index: {}]
  %s5 = inlined_call_operand.hbm [shape: bf16[32,224], index: 5, kind: input, shape index: {}]
  %s6 = inlined_call_operand.vmem [shape: f32[1,224], index: 6, kind: input, shape index: {}]
  %s7 = inlined_call_operand.hbm [shape: f32[2,128], index: 7, kind: output, shape index: {}]
  %s8 = sld [smem:[#allocation0]]
  $region58: #{tpu_custom_call.1} parent=0
    _
  %s10 = ssub.s32 1, %s8
  %s11 = scalar_select 0, %s10, %s8
  $region1: #{tpu_custom_call.1} parent=0
    #allocation2 [shape = 'u8[1024]{0}', space=vmem, size = 0x400, scoped, tag = 'input window, operand 0, single buffered']
    #allocation3 [shape = 's32[1]{0}', space=sflag, size = 0x4, scoped, tag = 'scoped memory for tpu_custom_call.1']
    #allocation4 [shape = 's32[1]{0}', space=sflag, size = 0x4, scoped, tag = 'scoped memory for tpu_custom_call.1']
    #allocation5 [shape = 'u8[1024]{0}', space=vmem, size = 0x400, scoped, tag = 'input window, operand 1, single buffered']
    #allocation6 [shape = 's32[1]{0}', space=sflag, size = 0x4, scoped, tag = 'scoped memory for tpu_custom_call.1']
    #allocation7 [shape = 'u8[1024]{0}', space=vmem, size = 0x400, scoped, tag = 'input window, operand 2, single buffered']
    #allocation8 [shape = 'u8[16384]{0}', space=vmem, size = 0x4000, scoped, tag = 'input window, operand 4, single buffered']
    #allocation9 [shape = 's32[1]{0}', space=sflag, size = 0x4, scoped, tag = 'scoped memory for tpu_custom_call.1']
    #allocation10 [shape = 'u8[16384]{0}', space=vmem, size = 0x4000, scoped, tag = 'input window, operand 5, single buffered']
    #allocation11 [shape = 'u8[1024]{0}', space=vmem, size = 0x400, scoped, tag = 'output window, operand 0, single buffered']
    %12 = vsyncpa [#allocation3], 0
    %13 = vsyncpa [#allocation6], 0
    %14 = vsyncpa [#allocation9], 0
    %15 = vsyncpa [#allocation4], 0
    // Predicated region
    $region2: #{tpu_custom_call.1} parent=1 // pred_check
      _
    $region3: #{tpu_custom_call.1} parent=1 // pred_check_branch
      %17 = sbr.rel (0) target = $region5
    $region4: #{tpu_custom_call.1} parent=1 // pred_region
      %19 = vsyncadd [#allocation3], 0
      %s21 = sshll.u32 %s0, 4
      %s22 = int_to_ptr.hbm [resolvable:$true] %s21
      %s23 = sshll.u32 [#allocation2], 4
      %s24 = int_to_ptr.vmem [resolvable:$true] %s23
      %26 = dma.hbm_to_vmem [thread:$0]  %s22, 32, %s24, [#allocation3]
    $region5: #{tpu_custom_call.1} parent=1 // pred_fallthru
      _
    // Predicated region
    $region6: #{tpu_custom_call.1} parent=1 // pred_check
      _
    $region7: #{tpu_custom_call.1} parent=1 // pred_check_branch
      %28 = sbr.rel (0) target = $region9
    $region8: #{tpu_custom_call.1} parent=1 // pred_region
      %30 = vsyncadd [#allocation6], 0
      %s32 = sshll.u32 %s1, 4
      %s33 = int_to_ptr.hbm [resolvable:$true] %s32
      %s34 = sshll.u32 [#allocation5], 4
      %s35 = int_to_ptr.vmem [resolvable:$true] %s34
      %37 = dma.hbm_to_vmem [thread:$0]  %s33, 32, %s35, [#allocation6]
    $region9: #{tpu_custom_call.1} parent=1 // pred_fallthru
      _
    // Predicated region
    $region10: #{tpu_custom_call.1} parent=1 // pred_check
      _
    $region11: #{tpu_custom_call.1} parent=1 // pred_check_branch
      %39 = sbr.rel (0) target = $region13
    $region12: #{tpu_custom_call.1} parent=1 // pred_region
      %41 = vsyncadd [#allocation6], 0
      %s43 = sshll.u32 %s2, 4
      %s44 = int_to_ptr.hbm [resolvable:$true] %s43
      %s45 = sshll.u32 [#allocation7], 4
      %s46 = int_to_ptr.vmem [resolvable:$true] %s45
      %48 = dma.hbm_to_vmem [thread:$0]  %s44, 32, %s46, [#allocation6]
    $region13: #{tpu_custom_call.1} parent=1 // pred_fallthru
      _
    // Predicated region
    $region14: #{tpu_custom_call.1} parent=1 // pred_check
      _
    $region15: #{tpu_custom_call.1} parent=1 // pred_check_branch
      %50 = sbr.rel (0) target = $region17
    $region16: #{tpu_custom_call.1} parent=1 // pred_region
      _
    $region17: #{tpu_custom_call.1} parent=1 // pred_fallthru
      _
    // Predicated region
    $region18: #{tpu_custom_call.1} parent=1 // pred_check
      _
    $region19: #{tpu_custom_call.1} parent=1 // pred_check_branch
      %52 = sbr.rel (0) target = $region21
    $region20: #{tpu_custom_call.1} parent=1 // pred_region
      %54 = vsyncadd [#allocation9], 0
      %s55 = sshll.u32 %s4, 4
      %s56 = int_to_ptr.hbm [resolvable:$true] %s55
      %s57 = sshll.u32 [#allocation8], 4
      %s58 = int_to_ptr.vmem [resolvable:$true] %s57
      %63 = dma.hbm_to_vmem [thread:$0]  %s56, 512, %s58, [#allocation9], 128, 128, 8
    $region21: #{tpu_custom_call.1} parent=1 // pred_fallthru
      _
    // Predicated region
    $region22: #{tpu_custom_call.1} parent=1 // pred_check
      _
    $region23: #{tpu_custom_call.1} parent=1 // pred_check_branch
      %65 = sbr.rel (0) target = $region25
    $region24: #{tpu_custom_call.1} parent=1 // pred_region
      %67 = vsyncadd [#allocation9], 0
      %s68 = sshll.u32 %s5, 4
      %s69 = int_to_ptr.hbm [resolvable:$true] %s68
      %s70 = sshll.u32 [#allocation10], 4
      %s71 = int_to_ptr.vmem [resolvable:$true] %s70
      %76 = dma.hbm_to_vmem [thread:$0]  %s69, 512, %s71, [#allocation9], 128, 128, 8
    $region25: #{tpu_custom_call.1} parent=1 // pred_fallthru
      _
    // Predicated region
    $region26: #{tpu_custom_call.1} parent=1 // pred_check
      _
    $region27: #{tpu_custom_call.1} parent=1 // pred_check_branch
      %78 = sbr.rel (0) target = $region29
    $region28: #{tpu_custom_call.1} parent=1 // pred_region
      _
    $region29: #{tpu_custom_call.1} parent=1 // pred_fallthru
      _
    // Predicated region
    $region30: #{tpu_custom_call.1} parent=1 // pred_check
      _
    $region31: #{tpu_custom_call.1} parent=1 // pred_check_branch
      %80 = sbr.rel (0) target = $region33
    $region32: #{tpu_custom_call.1} parent=1 // pred_region
      %82 = dma.done [#allocation3], 32
    $region33: #{tpu_custom_call.1} parent=1 // pred_fallthru
      _
    // Predicated region
    $region34: #{tpu_custom_call.1} parent=1 // pred_check
      _
    $region35: #{tpu_custom_call.1} parent=1 // pred_check_branch
      %84 = sbr.rel (0) target = $region37
    $region36: #{tpu_custom_call.1} parent=1 // pred_region
      %86 = dma.done [#allocation6], 32
    $region37: #{tpu_custom_call.1} parent=1 // pred_fallthru
      _
    // Predicated region
    $region38: #{tpu_custom_call.1} parent=1 // pred_check
      _
    $region39: #{tpu_custom_call.1} parent=1 // pred_check_branch
      %88 = sbr.rel (0) target = $region41
    $region40: #{tpu_custom_call.1} parent=1 // pred_region
      %90 = dma.done [#allocation6], 32
    $region41: #{tpu_custom_call.1} parent=1 // pred_fallthru
      _
    // Predicated region
    $region42: #{tpu_custom_call.1} parent=1 // pred_check
      _
    $region43: #{tpu_custom_call.1} parent=1 // pred_check_branch
      %92 = sbr.rel (0) target = $region45
    $region44: #{tpu_custom_call.1} parent=1 // pred_region
      %94 = dma.done [#allocation9], 512
    $region45: #{tpu_custom_call.1} parent=1 // pred_fallthru
      _
    // Predicated region
    $region46: #{tpu_custom_call.1} parent=1 // pred_check
      _
    $region47: #{tpu_custom_call.1} parent=1 // pred_check_branch
      %96 = sbr.rel (0) target = $region49
    $region48: #{tpu_custom_call.1} parent=1 // pred_region
      %98 = dma.done [#allocation9], 512
    $region49: #{tpu_custom_call.1} parent=1 // pred_fallthru
      _
    %v100 = vld [vmem:[#allocation2] sm:$0x3]
    %v101 = vld [vmem:[#allocation5] sm:$0x3]
    %v102 = vld [vmem:[#allocation7] sm:$0x3]
    %v103 = vld [vmem:[%s3] sm:$0x3]
    %v104 = vpack.c.bf16 %v100, %v100
    %v105 = vld [vmem:[#allocation8] sm:$0xff]
    %v106 = vld [vmem:[#allocation8 + $0x8] sm:$0xff]
    %v107 = vld [vmem:[#allocation8 + $0x10] sm:$0xff]
    %v108 = vld [vmem:[#allocation8 + $0x18] sm:$0xff]
    %v109 = vpack.c.bf16 %v101, %v101
    %v110 = vld [vmem:[#allocation10] sm:$0xff]
    %v111 = vld [vmem:[#allocation10 + $0x8] sm:$0xff]
    %v112 = vld [vmem:[#allocation10 + $0x10] sm:$0xff]
    %v113 = vld [vmem:[#allocation10 + $0x18] sm:$0xff]
    %v118 = vunpack.c.l.b16 %v110
    %v119 = vunpack.c.h.b16 %v110
    %v120 = vunpack.c.l.b16 %v111
    %v121 = vunpack.c.h.b16 %v111
    %v122 = vunpack.c.l.b16 %v112
    %v123 = vunpack.c.h.b16 %v112
    %v124 = vunpack.c.l.b16 %v113
    %v125 = vunpack.c.h.b16 %v113
    %v126 = vpack.c.b16 %v120, %v118
    %v127 = vpack.c.b16 %v121, %v119
    %v128 = vpack.c.b16 %v124, %v122
    %v129 = vpack.c.b16 %v125, %v123
    %vm134 = vcmask 261120
    %v136 = vsel %vm134, %v109, 0
    %138 = vmatpush.bf16.msra.mxu0 0
    %139 = vmatpush.bf16.msra.mxu0 0
    %140 = vmatpush.bf16.msra.mxu0 0
    %141 = vmatpush.bf16.msra.mxu0 0
    %142 = vmatpush.bf16.msra.mxu0 0
    %143 = vmatpush.bf16.msra.mxu0 0
    %144 = vmatpush.bf16.msra.mxu0 %v128
    %145 = vmatpush.bf16.msra.mxu0 %v126
    %146 = vmatmul.bf16.gmra.mxu0 %v136
    %v147 = vpop.f32.mrf.mxu0
    %v148 = vadd.f32 0.0, %v147
    %v149 = vpop.f32.mrf.mxu0
    %150 = vdwg.mxu0
    %151 = vmatpush.bf16.msra.mxu0 0
    %152 = vmatpush.bf16.msra.mxu0 0
    %153 = vmatpush.bf16.msra.mxu0 0
    %154 = vmatpush.bf16.msra.mxu0 0
    %155 = vmatpush.bf16.msra.mxu0 0
    %156 = vmatpush.bf16.msra.mxu0 0
    %157 = vmatpush.bf16.msra.mxu0 %v129
    %158 = vmatpush.bf16.msra.mxu0 %v127
    %159 = vmatmul.bf16.gmra.mxu0 %v136
    %v160 = vpop.f32.mrf.mxu0
    %v161 = vadd.f32 0.0, %v160
    %v162 = vpop.f32.mrf.mxu0
    %163 = vdwg.mxu0
    %v168 = vunpack.c.l.b16 %v105
    %v169 = vunpack.c.h.b16 %v105
    %v170 = vunpack.c.l.b16 %v106
    %v171 = vunpack.c.h.b16 %v106
    %v172 = vunpack.c.l.b16 %v107
    %v173 = vunpack.c.h.b16 %v107
    %v174 = vunpack.c.l.b16 %v108
    %v175 = vunpack.c.h.b16 %v108
    %v176 = vpack.c.b16 %v170, %v168
    %v177 = vpack.c.b16 %v171, %v169
    %v178 = vpack.c.b16 %v174, %v172
    %v179 = vpack.c.b16 %v175, %v173
    %v185 = vsel %vm134, %v104, 0
    %187 = vmatpush.bf16.msra.mxu0 0
    %188 = vmatpush.bf16.msra.mxu0 0
    %189 = vmatpush.bf16.msra.mxu0 0
    %190 = vmatpush.bf16.msra.mxu0 0
    %191 = vmatpush.bf16.msra.mxu0 0
    %192 = vmatpush.bf16.msra.mxu0 0
    %193 = vmatpush.bf16.msra.mxu0 %v178
    %194 = vmatpush.bf16.msra.mxu0 %v176
    %195 = vmatmul.bf16.gmra.mxu0 %v185
    %v196 = vpop.f32.mrf.mxu0
    %v197 = vadd.f32 %v148, %v196
    %v198 = vpop.f32.mrf.mxu0
    %199 = vdwg.mxu0
    %200 = vmatpush.bf16.msra.mxu0 0
    %201 = vmatpush.bf16.msra.mxu0 0
    %202 = vmatpush.bf16.msra.mxu0 0
    %203 = vmatpush.bf16.msra.mxu0 0
    %204 = vmatpush.bf16.msra.mxu0 0
    %205 = vmatpush.bf16.msra.mxu0 0
    %206 = vmatpush.bf16.msra.mxu0 %v179
    %207 = vmatpush.bf16.msra.mxu0 %v177
    %208 = vmatmul.bf16.gmra.mxu0 %v185
    %v209 = vpop.f32.mrf.mxu0
    %v210 = vadd.f32 %v161, %v209
    %v211 = vpop.f32.mrf.mxu0
    %212 = vdwg.mxu0
    %v213 = vld [vmem:[%s6] sm:$0x3]
    %v215 = vperm.slane %v213, 0
    %v216 = vperm.slane %v213, 1
    %v219 = vadd.f32 %v197, %v215
    %v220 = vadd.f32 %v210, %v216
    %v221 = vxor.u32 %v219, 2147483648
    %v222 = vmul.f32 %v221, 1.442695
    %v223 = vpow.pop %v222
    %v224 = vadd.f32 %v223, 1.0
    %v225 = vrcp.pop %v224
    %v226 = vmul.f32 %v224, %v225
    %v227 = vsub.f32 1.0, %v226
    %v228 = vmul.f32 %v225, %v227
    %v229 = vadd.f32 %v225, %v228
    %vm230 = vweird.f32 %v224
    %vm231 = vweird.f32 %v225
    %vm232 = vmor %vm230, %vm231
    %v233 = vsel %vm232, %v225, %v229
    %v234 = vand.u32 2147483647, %v224
    %vm235 = vcmp.eq.f32.partialorder %v234, 8.507059e+37
    %v236 = vand.u32 %v224, 2147483648
    %v237 = vor.u32 1.1754944e-38, %v236
    %v238 = vsel %vm235, %v237, %v233
    %v239 = vmul.f32 1.0, %v238
    %v240 = vtanh.pop %v219
    %v241 = vxor.u32 %v220, 2147483648
    %v242 = vmul.f32 %v241, 1.442695
    %v243 = vpow.pop %v242
    %v244 = vadd.f32 %v243, 1.0
    %v245 = vrcp.pop %v244
    %v246 = vmul.f32 %v244, %v245
    %v247 = vsub.f32 1.0, %v246
    %v248 = vmul.f32 %v245, %v247
    %v249 = vadd.f32 %v245, %v248
    %vm250 = vweird.f32 %v244
    %vm251 = vweird.f32 %v245
    %vm252 = vmor %vm250, %vm251
    %v253 = vsel %vm252, %v245, %v249
    %v254 = vand.u32 2147483647, %v244
    %vm255 = vcmp.eq.f32.partialorder %v254, 8.507059e+37
    %v256 = vand.u32 %v244, 2147483648
    %v257 = vor.u32 1.1754944e-38, %v256
    %v258 = vsel %vm255, %v257, %v253
    %v259 = vmul.f32 1.0, %v258
    %v260 = vmax.f32 %v220, 0.0
    %vm261 = vcmp.ne.f32.partialorder %v220, %v220
    %v262 = vadd.f32 %v220, 0.0
    %v263 = vand.u32 2147483647, %v220
    %v264 = vsub.f32 0.0, %v263
    %v265 = vmul.f32 %v264, 1.442695
    %v266 = vpow.pop %v265
    %v267 = vadd.f32 %v266, 1.0
    %v268 = vlog2.pop %v267
    %v269 = vmul.f32 %v268, 0.6931472
    %v270 = vmul.f32 -0.5, %v266
    %v271 = vadd.f32 %v270, 1.0
    %v272 = vmul.f32 %v271, %v266
    %v273 = vand.u32 2147483647, %v266
    %vm274 = vcmp.lt.f32.partialorder %v273, 0.0004427343
    %v275 = vsel %vm274, %v272, %v269
    %v276 = vadd.f32 %v260, %v275
    %v277 = vsel %vm261, %v262, %v276
    %279 = vrot.lane.b32.xlu0 %v102, 32
    %v280 = vpop.permute.xlu0 %279
    %v282 = vmul.f32 %v239, %v280
    %284 = vrot.lane.b32.xlu0 %v240, 32
    %v285 = vpop.permute.xlu0 %284
    %v287 = vmul.f32 %v239, %v285
    %289 = vrot.lane.b32.xlu0 %v287, 32
    %v290 = vpop.permute.xlu0 %289
    %v292 = vadd.f32 %v282, %v290
    %294 = vrot.lane.b32.xlu0 %v103, 32
    %v295 = vpop.permute.xlu0 %294
    %v297 = vmul.f32 %v259, %v295
    %v298 = vmul.f32 %v259, %v285
    %300 = vrot.lane.b32.xlu0 %v298, 32
    %v301 = vpop.permute.xlu0 %300
    %v303 = vadd.f32 %v297, %v301
    %305 = vrot.lane.b32.xlu0 %v292, 96
    %v306 = vpop.permute.xlu0 %305
    %309 = vrot.lane.b32.xlu0 %v239, 32
    %v310 = vpop.permute.xlu0 %309
    %v312 = vsel %vm134, %v306, %v303
    %vm313 = vcmask 523264
    %v314 = vsel %vm313, %v312, %v277
    %vm315 = vcmask 785408
    %v316 = vsel %vm315, %v314, %v310
    %317 = vst [vmem:[#allocation11] sm:$0x3] %v316
    // Predicated region
    $region50: #{tpu_custom_call.1} parent=1 // pred_check
      _
    $region51: #{tpu_custom_call.1} parent=1 // pred_check_branch
      %319 = sbr.rel (0) target = $region53
    $region52: #{tpu_custom_call.1} parent=1 // pred_region
      %321 = vsyncadd [#allocation4], 0
      %s323 = sshll.u32 [#allocation11], 4
      %s324 = int_to_ptr.vmem [resolvable:$true] %s323
      %s325 = sshll.u32 %s7, 4
      %s326 = int_to_ptr.hbm [resolvable:$true] %s325
      %328 = dma.vmem_to_hbm [thread:$0]  %s324, 32, %s326, [#allocation4]
    $region53: #{tpu_custom_call.1} parent=1 // pred_fallthru
      _
    // Predicated region
    $region54: #{tpu_custom_call.1} parent=1 // pred_check
      _
    $region55: #{tpu_custom_call.1} parent=1 // pred_check_branch
      %330 = sbr.rel (0) target = $region57
    $region56: #{tpu_custom_call.1} parent=1 // pred_region
      %332 = dma.done [#allocation4], 32
    $region57: #{tpu_custom_call.1} parent=1 // pred_fallthru
      _
    %333 = vsyncpa [#allocation3], 1
    %334 = vsyncpa [#allocation6], 1
    %335 = vsyncpa [#allocation9], 1
    %336 = vsyncpa [#allocation4], 1

</llo_original>
